<compile_context>
chip_gen: v7x
topology: tpu7x:2x2x1
jax: 0.10.0
libtpu: 0.0.40
codegen_flags: <defaults>
</compile_context>

<pallas_src>
import functools

import jax
import jax.numpy as jnp
from jax.experimental import pallas as pl
from jax.experimental.pallas import tpu as pltpu

EPS = 1e-5
LANE = 128      # TPU lane width   -> pad Cout to a multiple of this
SUBLANE = 8     # f32 sublane pack -> pad K to a multiple of this


def _round_up(x, m):
    return (x + m - 1) // m * m


def _conv_stats_kernel(p_ref, w_ref, part_ref):
    """Pass 1: conv matmul for one M-tile + per-channel sum / sum-of-squares."""
    y = jnp.dot(p_ref[...], w_ref[...], preferred_element_type=jnp.float32)
    s = jnp.sum(y, axis=0, keepdims=True)          # (1, Cpad)  cross-sublane (XLU)
    ss = jnp.sum(y * y, axis=0, keepdims=True)     # (1, Cpad)
    part_ref[0] = jnp.concatenate([s, ss], axis=0)  # per-tile partial, (2, Cpad)


def _conv_norm_kernel(p_ref, w_ref, scale_ref, shift_ref, o_ref):
    """Pass 2: conv matmul for one M-tile + fused BatchNorm scale/shift."""
    y = jnp.dot(p_ref[...], w_ref[...], preferred_element_type=jnp.float32)
    o_ref[...] = (y * scale_ref[...] + shift_ref[...]).astype(o_ref.dtype)


@functools.partial(jax.jit, static_argnames=("tile_m", "compute_dtype"))
def conv_batchnorm(x_nchw, w_oihw, bias, gamma, beta, *,
                   tile_m=1024, compute_dtype=jnp.float32):
    del bias  # exact: (y + b) - mean(y + b) == y - mean(y); bias cancels under BN

    N, Cin, H, W = x_nchw.shape
    Cout, _, kh, kw = w_oihw.shape
    ph, pw = kh // 2, kw // 2                      # 'same' padding, stride 1
    M = N * H * W
    K = kh * kw * Cin

    tile_m = max(16, _round_up(int(tile_m), 16))   # sublane-friendly (f32 & bf16)
    Kpad = _round_up(K, SUBLANE)
    Cpad = _round_up(Cout, LANE)                   # lane-dense output / MXU cols
    Mp = _round_up(M, tile_m)
    n_tiles = Mp // tile_m

    # ---- wrapper glue: NCHW -> NHWC, pad, im2col (tap order ky, kx, cin) ----
    x = jnp.transpose(x_nchw, (0, 2, 3, 1)).astype(jnp.float32)
    xp = jnp.pad(x, ((0, 0), (ph, ph), (pw, pw), (0, 0)))
    cols = [xp[:, i:i + H, j:j + W, :] for i in range(kh) for j in range(kw)]
    patches = jnp.concatenate(cols, axis=-1).reshape(M, K)
    patches = jnp.pad(patches, ((0, Mp - M), (0, Kpad - K))).astype(compute_dtype)

    # PyTorch conv weight (Cout, Cin, kh, kw) -> (kh, kw, Cin, Cout) -> (Kpad, Cpad)
    w_mat = jnp.transpose(w_oihw, (2, 3, 1, 0)).reshape(K, Cout).astype(jnp.float32)
    w_mat = jnp.pad(w_mat, ((0, Kpad - K), (0, Cpad - Cout))).astype(compute_dtype)

    itemsize = jnp.dtype(compute_dtype).itemsize
    vmem_est = (2 * tile_m * Kpad * itemsize       # double-buffered patch tile
                + Kpad * Cpad * itemsize           # resident weight tile
                + 2 * tile_m * Cpad * 4            # double-buffered f32 y/out tile
                + 4 * Cpad * 4                     # partials / scale / shift
                + (1 << 20))                       # headroom
    vmem_limit = int(min(32 * 2 ** 20, max(4 * 2 ** 20, 2 * vmem_est)))
    cparams = pltpu.CompilerParams(dimension_semantics=("parallel",),
                                   vmem_limit_bytes=vmem_limit)

    # ---- pass 1: per-tile conv + per-channel sum / sumsq partials ----
    partials = pl.pallas_call(
        _conv_stats_kernel,
        out_shape=jax.ShapeDtypeStruct((n_tiles, 2, Cpad), jnp.float32),
        grid=(n_tiles,),
        in_specs=[
            pl.BlockSpec((tile_m, Kpad), lambda i: (i, 0)),
            pl.BlockSpec((Kpad, Cpad), lambda i: (0, 0)),
        ],
        out_specs=pl.BlockSpec((1, 2, Cpad), lambda i: (i, 0, 0)),
        compiler_params=cparams,
    )(patches, w_mat)

    # ---- finalize statistics (tiny, O(Cout)); divide by the TRUE M ----
    sums = jnp.sum(partials, axis=0)               # (2, Cpad) f32
    mean = sums[0] / M                             # zero-padded rows contribute 0
    var = jnp.maximum(sums[1] / M - mean * mean, 0.0)   # biased variance (train mode)
    inv = jax.lax.rsqrt(var + EPS)
    gamma_p = jnp.pad(gamma.astype(jnp.float32), (0, Cpad - Cout))
    beta_p = jnp.pad(beta.astype(jnp.float32), (0, Cpad - Cout))
    scale = (gamma_p * inv).reshape(1, Cpad)
    shift = (beta_p - mean * gamma_p * inv).reshape(1, Cpad)

    # ---- pass 2: per-tile conv + fused normalize, lane-dense stores ----
    out_pad = pl.pallas_call(
        _conv_norm_kernel,
        out_shape=jax.ShapeDtypeStruct((Mp, Cpad), x_nchw.dtype),
        grid=(n_tiles,),
        in_specs=[
            pl.BlockSpec((tile_m, Kpad), lambda i: (i, 0)),
            pl.BlockSpec((Kpad, Cpad), lambda i: (0, 0)),
            pl.BlockSpec((1, Cpad), lambda i: (0, 0)),
            pl.BlockSpec((1, Cpad), lambda i: (0, 0)),
        ],
        out_specs=pl.BlockSpec((tile_m, Cpad), lambda i: (i, 0)),
        compiler_params=cparams,
    )(patches, w_mat, scale, shift)

    out = out_pad[:M, :Cout].reshape(N, H, W, Cout)
    return jnp.transpose(out, (0, 3, 1, 2))        # back to NCHW


if __name__ == "__main__":
    key = jax.random.PRNGKey(0)
    k1, k2, k3 = jax.random.split(key, 3)

    # small shapes consistent with the module's forward (NCHW conv input)
    N, Cin, H, W = 2, 4, 16, 16
    Cout, kh, kw = 8, 3, 3

    x = jax.random.normal(k1, (N, Cin, H, W), jnp.float32)

    # deterministic PyTorch-style Conv2d init: U(-b, b), b = 1/sqrt(Cin*kh*kw)
    bound = 1.0 / (Cin * kh * kw) ** 0.5
    w = jax.random.uniform(k2, (Cout, Cin, kh, kw), jnp.float32, -bound, bound)
    b = jax.random.uniform(k3, (Cout,), jnp.float32, -bound, bound)

    # nn.BatchNorm2d default affine params
    gamma = jnp.ones((Cout,), jnp.float32)
    beta = jnp.zeros((Cout,), jnp.float32)

    # pure-JAX reference (includes the conv bias -- BN cancels it exactly)
    ref_conv = jax.lax.conv_general_dilated(
        x, w, window_strides=(1, 1), padding="SAME",
        dimension_numbers=("NCHW", "OIHW", "NCHW")) + b.reshape(1, Cout, 1, 1)
    r_mean = ref_conv.mean(axis=(0, 2, 3), keepdims=True)
    r_var = ref_conv.var(axis=(0, 2, 3), keepdims=True)
    ref = ((ref_conv - r_mean) * jax.lax.rsqrt(r_var + EPS)
           * gamma.reshape(1, Cout, 1, 1) + beta.reshape(1, Cout, 1, 1))

    # f32 MXU path, evenly tiled grid (M=512 -> 4 tiles of 128 rows)
    out = jax.block_until_ready(
        conv_batchnorm(x, w, b, gamma, beta, tile_m=128))
    assert jnp.allclose(out, ref, atol=1e-4, rtol=1e-4), "f32 path mismatch"

    # bf16 MXU path (v6e/v7x fast path) + ragged last tile (512 = 5*96 + 32)
    out_bf16 = jax.block_until_ready(
        conv_batchnorm(x, w, b, gamma, beta, tile_m=96,
                       compute_dtype=jnp.bfloat16))
    assert jnp.allclose(out_bf16, ref, atol=5e-2, rtol=5e-2), "bf16 path mismatch"

    print("KERNEL_OK")
</pallas_src>

<mosaic_0001>
module attributes {stable_mosaic.version = 11 : i64} {
  func.func @_conv_stats_kernel(%arg0: i32, %arg1: memref<128x40xf32, #tpu.memory_space<vmem>>, %arg2: memref<40x128xf32, #tpu.memory_space<vmem>>, %arg3: memref<1x2x128xf32, #tpu.memory_space<vmem>>) attributes {dimension_semantics = [#tpu.dimension_semantics<parallel>], iteration_bounds = array<i64: 4>, scalar_prefetch = 0 : i64, scratch_operands = 0 : i64, tpu.core_type = #tpu.core_type<tc>, window_params = [{transform_indices = @transform_0, window_bounds = array<i64: 128, 40>}, {pipeline_mode = #tpu.pipeline_mode<synchronous>, transform_indices = @transform_1, window_bounds = array<i64: 40, 128>}, {transform_indices = @transform_2, window_bounds = array<i64: 1, 2, 128>}]} {
    %c0 = arith.constant 0 : index
    %c0_0 = arith.constant 0 : index
    %0 = vector.load %arg1[%c0, %c0_0] : memref<128x40xf32, #tpu.memory_space<vmem>>, vector<128x40xf32>
    %c0_1 = arith.constant 0 : index
    %c0_2 = arith.constant 0 : index
    %1 = vector.load %arg2[%c0_1, %c0_2] : memref<40x128xf32, #tpu.memory_space<vmem>>, vector<40x128xf32>
    %cst = arith.constant dense<0.000000e+00> : vector<128x128xf32>
    %2 = tpu.matmul %0, %1, %cst {dimension_numbers = #tpu.dot_dimension_numbers<[1], [0], [0], [1], [0, 0, 1, 1], [], []>} : vector<128x40xf32>, vector<40x128xf32>, vector<128x128xf32> -> vector<128x128xf32>
    %cst_3 = arith.constant dense<0.000000e+00> : vector<128xf32>
    %3 = vector.multi_reduction <add>, %2, %cst_3 [0] : vector<128x128xf32> to vector<128xf32>
    %4 = vector.shape_cast %3 : vector<128xf32> to vector<1x128xf32>
    %5 = arith.mulf %2, %2 : vector<128x128xf32>
    %cst_4 = arith.constant dense<0.000000e+00> : vector<128xf32>
    %6 = vector.multi_reduction <add>, %5, %cst_4 [0] : vector<128x128xf32> to vector<128xf32>
    %7 = vector.shape_cast %6 : vector<128xf32> to vector<1x128xf32>
    %8 = tpu.concatenate %4, %7 in 0 : vector<1x128xf32>, vector<1x128xf32> -> vector<2x128xf32>
    %c0_5 = arith.constant 0 : index
    %c0_6 = arith.constant 0 : index
    %c0_7 = arith.constant 0 : index
    %9 = vector.load %arg3[%c0_5, %c0_6, %c0_7] : memref<1x2x128xf32, #tpu.memory_space<vmem>>, vector<1x2x128xf32>
    %10 = vector.shape_cast %9 : vector<1x2x128xf32> to vector<2x128xf32>
    %11 = vector.shape_cast %8 : vector<2x128xf32> to vector<1x2x128xf32>
    tpu.vector_store %arg3[%c0_5, %c0_6, %c0_7], %11 {strides = array<i32>} : memref<1x2x128xf32, #tpu.memory_space<vmem>>, vector<1x2x128xf32>,
    return
  }
  func.func @transform_0(%arg0: i32) -> (i32, i32) {
    %c0_i32 = arith.constant 0 : i32
    %c0_i32_0 = arith.constant 0 : i32
    return %arg0, %c0_i32 : i32, i32
  }
  func.func @transform_1(%arg0: i32) -> (i32, i32) {
    %c0_i32 = arith.constant 0 : i32
    %c0_i32_0 = arith.constant 0 : i32
    %c0_i32_1 = arith.constant 0 : i32
    return %c0_i32, %c0_i32_0 : i32, i32
  }
  func.func @transform_2(%arg0: i32) -> (i32, i32, i32) {
    %c0_i32 = arith.constant 0 : i32
    %c0_i32_0 = arith.constant 0 : i32
    %c0_i32_1 = arith.constant 0 : i32
    return %arg0, %c0_i32, %c0_i32_0 : i32, i32, i32
  }
}

module attributes {stable_mosaic.version = 11 : i64} {
  func.func @_conv_norm_kernel(%arg0: i32, %arg1: memref<128x40xf32, #tpu.memory_space<vmem>>, %arg2: memref<40x128xf32, #tpu.memory_space<vmem>>, %arg3: memref<1x128xf32, #tpu.memory_space<vmem>>, %arg4: memref<1x128xf32, #tpu.memory_space<vmem>>, %arg5: memref<128x128xf32, #tpu.memory_space<vmem>>) attributes {dimension_semantics = [#tpu.dimension_semantics<parallel>], iteration_bounds = array<i64: 4>, scalar_prefetch = 0 : i64, scratch_operands = 0 : i64, tpu.core_type = #tpu.core_type<tc>, window_params = [{transform_indices = @transform_0, window_bounds = array<i64: 128, 40>}, {pipeline_mode = #tpu.pipeline_mode<synchronous>, transform_indices = @transform_1, window_bounds = array<i64: 40, 128>}, {pipeline_mode = #tpu.pipeline_mode<synchronous>, transform_indices = @transform_2, window_bounds = array<i64: 1, 128>}, {pipeline_mode = #tpu.pipeline_mode<synchronous>, transform_indices = @transform_3, window_bounds = array<i64: 1, 128>}, {transform_indices = @transform_4, window_bounds = array<i64: 128, 128>}]} {
    %c0 = arith.constant 0 : index
    %c0_0 = arith.constant 0 : index
    %0 = vector.load %arg1[%c0, %c0_0] : memref<128x40xf32, #tpu.memory_space<vmem>>, vector<128x40xf32>
    %c0_1 = arith.constant 0 : index
    %c0_2 = arith.constant 0 : index
    %1 = vector.load %arg2[%c0_1, %c0_2] : memref<40x128xf32, #tpu.memory_space<vmem>>, vector<40x128xf32>
    %cst = arith.constant dense<0.000000e+00> : vector<128x128xf32>
    %2 = tpu.matmul %0, %1, %cst {dimension_numbers = #tpu.dot_dimension_numbers<[1], [0], [0], [1], [0, 0, 1, 1], [], []>} : vector<128x40xf32>, vector<40x128xf32>, vector<128x128xf32> -> vector<128x128xf32>
    %c0_3 = arith.constant 0 : index
    %c0_4 = arith.constant 0 : index
    %3 = vector.load %arg3[%c0_3, %c0_4] : memref<1x128xf32, #tpu.memory_space<vmem>>, vector<1x128xf32>
    %4 = vector.broadcast %3 : vector<1x128xf32> to vector<128x128xf32>
    %5 = arith.mulf %2, %4 : vector<128x128xf32>
    %c0_5 = arith.constant 0 : index
    %c0_6 = arith.constant 0 : index
    %6 = vector.load %arg4[%c0_5, %c0_6] : memref<1x128xf32, #tpu.memory_space<vmem>>, vector<1x128xf32>
    %7 = vector.broadcast %6 : vector<1x128xf32> to vector<128x128xf32>
    %8 = arith.addf %5, %7 : vector<128x128xf32>
    %c0_7 = arith.constant 0 : index
    %c0_8 = arith.constant 0 : index
    %9 = vector.load %arg5[%c0_7, %c0_8] : memref<128x128xf32, #tpu.memory_space<vmem>>, vector<128x128xf32>
    tpu.vector_store %arg5[%c0_7, %c0_8], %8 {strides = array<i32>} : memref<128x128xf32, #tpu.memory_space<vmem>>, vector<128x128xf32>,
    return
  }
  func.func @transform_0(%arg0: i32) -> (i32, i32) {
    %c0_i32 = arith.constant 0 : i32
    %c0_i32_0 = arith.constant 0 : i32
    return %arg0, %c0_i32 : i32, i32
  }
  func.func @transform_1(%arg0: i32) -> (i32, i32) {
    %c0_i32 = arith.constant 0 : i32
    %c0_i32_0 = arith.constant 0 : i32
    %c0_i32_1 = arith.constant 0 : i32
    return %c0_i32, %c0_i32_0 : i32, i32
  }
  func.func @transform_2(%arg0: i32) -> (i32, i32) {
    %c0_i32 = arith.constant 0 : i32
    %c0_i32_0 = arith.constant 0 : i32
    %c0_i32_1 = arith.constant 0 : i32
    return %c0_i32, %c0_i32_0 : i32, i32
  }
  func.func @transform_3(%arg0: i32) -> (i32, i32) {
    %c0_i32 = arith.constant 0 : i32
    %c0_i32_0 = arith.constant 0 : i32
    %c0_i32_1 = arith.constant 0 : i32
    return %c0_i32, %c0_i32_0 : i32, i32
  }
  func.func @transform_4(%arg0: i32) -> (i32, i32) {
    %c0_i32 = arith.constant 0 : i32
    %c0_i32_0 = arith.constant 0 : i32
    return %arg0, %c0_i32 : i32, i32
  }
}

</mosaic_0001>

<llo_original>
// kernel: conv_batchnorm.2
$region0: #{conv_batchnorm.2}
  #allocation0 [shape = 'u32[]', space=smem, size = 0x4, offset = 0x4, fixed_abs, tag = 'smem constant byte address 0x4 - core index']
  #allocation1 [shape = 'u32[144,128]{1,0:T(1,128)}', space=vmem, size = 0x12000, scoped, tag = 'internal scratch']
  %s0 = inlined_call_operand.vmem [shape: f32[512,40], index: 0, kind: input, shape index: {}]
  %s1 = inlined_call_operand.vmem [shape: f32[40,128], index: 1, kind: input, shape index: {}]
  %s2 = inlined_call_operand.vmem [shape: f32[4,2,128], index: 2, kind: output, shape index: {}]
  %s3 = sld [smem:[#allocation0]]
  $region41: #{conv_batchnorm.2} parent=0
    _
  %s5 = ssub.s32 1, %s3
  %s6 = scalar_select 0, %s5, %s3
  loop: start=0, step=1, limit=6
  $region2: #{conv_batchnorm.2} parent=0 // loop_pre_header
    _
  $region3: #{conv_batchnorm.2} parent=0 // loop_header
    %s8 = sphi 0, %s12
    %p9 = scmp.ge.s32.totalorder %s8, 6
    %s18 = sphi 0, %s20
    %s21 = sphi 0, %s18
    %s22 = sphi 0, %s21
    %s38 = sphi 0, %s22
    %s42 = sphi 0, %s42
    %s44 = sphi 0, %s42
    %s45 = sphi 0, %s44
    %s59 = sphi 0, %s45
    %s65 = sphi 0, %s67
    %s68 = sphi 0, %s65
    %s69 = sphi 0, %s68
    %s85 = sphi 0, %s69
  $region4: #{conv_batchnorm.2} parent=0 // loop_header_branch
    %11 = sbr.rel (%p9) target = $region8
  $region5: #{conv_batchnorm.2} parent=0 // loop_body
    %s13 = ssub.s32 %s8, 1
    %s14 = ssub.s32 %s8, 2
    %s15 = sadd.s32 %s8, 1
    %s16 = ssub.s32 %s8, %s15
    %p17 = scmp.eq.s32.totalorder %s16, 0
    %s19 = sadd.s32 %s18, 1
    %s20 = scalar_select %p17, %s18, %s19
    %p23 = pneg %p17
    %p24 = scmp.eq.s32.totalorder %s8, 3
    %p25 = por %p23, %p24
    %p26 = scmp.ne.s32.totalorder %s18, %s21
    %p27 = scmp.eq.s32.totalorder %s8, 0
    %p28 = por %p26, %p27
    %p29 = scmp.ne.s32.totalorder %s18, %s21
    %p30 = scmp.eq.s32.totalorder %s13, 3
    %p31 = por %p29, %p30
    %p32 = scmp.ne.s32.totalorder %s21, %s22
    %p33 = scmp.eq.s32.totalorder %s13, 0
    %p34 = por %p32, %p33
    %p35 = scmp.ne.s32.totalorder %s21, %s22
    %p36 = scmp.eq.s32.totalorder %s14, 3
    %p37 = por %p35, %p36
    %p39 = scmp.ne.s32.totalorder %s22, %s38
    %p40 = scmp.eq.s32.totalorder %s14, 0
    %p41 = por %p39, %p40
    %s43 = sadd.s32 %s42, 1
    %p46 = scmp.eq.s32.totalorder %s8, 3
    %p47 = scmp.ne.s32.totalorder %s42, %s44
    %p48 = scmp.eq.s32.totalorder %s8, 0
    %p49 = por %p47, %p48
    %p50 = scmp.ne.s32.totalorder %s42, %s44
    %p51 = scmp.eq.s32.totalorder %s13, 3
    %p52 = por %p50, %p51
    %p53 = scmp.ne.s32.totalorder %s44, %s45
    %p54 = scmp.eq.s32.totalorder %s13, 0
    %p55 = por %p53, %p54
    %p56 = scmp.ne.s32.totalorder %s44, %s45
    %p57 = scmp.eq.s32.totalorder %s14, 3
    %p58 = por %p56, %p57
    %p60 = scmp.ne.s32.totalorder %s45, %s59
    %p61 = scmp.eq.s32.totalorder %s14, 0
    %p62 = por %p60, %p61
    %s63 = ssub.s32 %s8, %s15
    %p64 = scmp.eq.s32.totalorder %s63, 0
    %s66 = sadd.s32 %s65, 1
    %s67 = scalar_select %p64, %s65, %s66
    %p70 = pneg %p64
    %p71 = scmp.eq.s32.totalorder %s8, 3
    %p72 = por %p70, %p71
    %p73 = scmp.ne.s32.totalorder %s65, %s68
    %p74 = scmp.eq.s32.totalorder %s8, 0
    %p75 = por %p73, %p74
    %p76 = scmp.ne.s32.totalorder %s65, %s68
    %p77 = scmp.eq.s32.totalorder %s13, 3
    %p78 = por %p76, %p77
    %p79 = scmp.ne.s32.totalorder %s68, %s69
    %p80 = scmp.eq.s32.totalorder %s13, 0
    %p81 = por %p79, %p80
    %p82 = scmp.ne.s32.totalorder %s68, %s69
    %p83 = scmp.eq.s32.totalorder %s14, 3
    %p84 = por %p82, %p83
    %p86 = scmp.ne.s32.totalorder %s69, %s85
    %p87 = scmp.eq.s32.totalorder %s14, 0
    %p88 = por %p86, %p87
    %p89 = scmp.le.s32.totalorder 1, %s8
    %p90 = scmp.lt.s32.totalorder %s8, 5
    %p91 = pnand %p89, %p90
    %p92 = pneg %p91
    // Predicated region
    $region9: #{conv_batchnorm.2} parent=5 // pred_check
      _
    $region10: #{conv_batchnorm.2} parent=5 // pred_check_branch
      %94 = sbr.rel (%p91) target = $region12
    $region11: #{conv_batchnorm.2} parent=5 // pred_region
      %s95 = ssub.s32 %s8, 1
      // Predicated region
      $region13: #{conv_batchnorm.2} parent=11 // pred_check
        %p96 = pneg %p55
      $region14: #{conv_batchnorm.2} parent=11 // pred_check_branch
        %98 = sbr.rel (%p96) target = $region16
      $region15: #{conv_batchnorm.2} parent=11 // pred_region
        _
      $region16: #{conv_batchnorm.2} parent=11 // pred_fallthru
        _
    $region12: #{conv_batchnorm.2} parent=5 // pred_fallthru
      _
    %p99 = scmp.lt.s32.totalorder %s8, 4
    // Predicated region
    $region17: #{conv_batchnorm.2} parent=5 // pred_check
      %p100 = pneg %p99
    $region18: #{conv_batchnorm.2} parent=5 // pred_check_branch
      %102 = sbr.rel (%p100) target = $region20
    $region19: #{conv_batchnorm.2} parent=5 // pred_region
      // Predicated region
      $region21: #{conv_batchnorm.2} parent=19 // pred_check
        %p103 = pneg %p28
      $region22: #{conv_batchnorm.2} parent=19 // pred_check_branch
        %105 = sbr.rel (%p103) target = $region24
      $region23: #{conv_batchnorm.2} parent=19 // pred_region
        %s106 = smul.u32 16, %s8
        %p107 = scmp.lt.s32.totalorder %s106, 63
        %s108 = scalar_select %p107, %s106, 63
        %s109 = smul.addr %s108, 8
        %s110 = scalar_lea.vmem %s0, %s109
        %s111 = smul.u32 16, %s8
      $region24: #{conv_batchnorm.2} parent=19 // pred_fallthru
        _
    $region20: #{conv_batchnorm.2} parent=5 // pred_fallthru
      _
    %p112 = scmp.le.s32.totalorder 1, %s8
    %p113 = scmp.lt.s32.totalorder %s8, 5
    %p114 = pnand %p112, %p113
    %p115 = pneg %p114
    // Predicated region
    $region25: #{conv_batchnorm.2} parent=5 // pred_check
      _
    $region26: #{conv_batchnorm.2} parent=5 // pred_check_branch
      %117 = sbr.rel (%p114) target = $region28
    $region27: #{conv_batchnorm.2} parent=5 // pred_region
      %s118 = ssub.s32 %s8, 1
      %s119 = smul.u32 16, %s13
      %p120 = scmp.lt.s32.totalorder %s119, 63
      %s121 = scalar_select %p120, %s119, 63
      %s122 = smul.addr %s121, 8
      %s123 = scalar_lea.vmem %s0, %s122
      %p124 = pneg %p34
      %p125 = pneg %p31
      %p126 = pneg %p55
      %p127 = pneg %p52
      %p128 = pneg %p81
      %p129 = pneg %p78
      %p130 = scmp.lt.s32.totalorder %s13, 3
      %s131 = scalar_select %p130, %s13, 3
      %s132 = smul.addr %s131, 2
      %s133 = scalar_lea.vmem %s2, %s132
      %s134 = smul.u32 16, %s13
      %p135 = scmp.lt.s32.totalorder %s134, 63
      %s136 = scalar_select %p135, %s134, 63
      %s137 = smul.addr %s136, 8
      %s138 = scalar_lea.vmem %s0, %s137
      %s139 = smul.u32 16, %s13
      %p140 = scmp.lt.s32.totalorder %s13, 3
      %s141 = scalar_select %p140, %s13, 3
      %s142 = smul.addr %s141, 2
      %s143 = scalar_lea.vmem %s2, %s142
      %v144 = vld [vmem:[%s138] sm:$0xff]
      %v145 = vld [vmem:[%s138 + $0x8] sm:$0xff]
      %v146 = vld [vmem:[%s138 + $0x10] sm:$0xff]
      %v147 = vld [vmem:[%s138 + $0x18] sm:$0xff]
      %v148 = vld [vmem:[%s138 + $0x20] sm:$0xff]
      %v149 = vld [vmem:[%s138 + $0x28] sm:$0xff]
      %v150 = vld [vmem:[%s138 + $0x30] sm:$0xff]
      %v151 = vld [vmem:[%s138 + $0x38] sm:$0xff]
      %v152 = vld [vmem:[%s138 + $0x40] sm:$0xff]
      %v153 = vld [vmem:[%s138 + $0x48] sm:$0xff]
      %v154 = vld [vmem:[%s138 + $0x50] sm:$0xff]
      %v155 = vld [vmem:[%s138 + $0x58] sm:$0xff]
      %v156 = vld [vmem:[%s138 + $0x60] sm:$0xff]
      %v157 = vld [vmem:[%s138 + $0x68] sm:$0xff]
      %v158 = vld [vmem:[%s138 + $0x70] sm:$0xff]
      %v159 = vld [vmem:[%s138 + $0x78] sm:$0xff]
      %v160 = vld [vmem:[%s1] sm:$0xff]
      %v161 = vld [vmem:[%s1 + $0x8] sm:$0xff]
      %v162 = vld [vmem:[%s1 + $0x10] sm:$0xff]
      %v163 = vld [vmem:[%s1 + $0x18] sm:$0xff]
      %v164 = vld [vmem:[%s1 + $0x20] sm:$0xff]
      %vm165 = vcmask 326656
      %v167 = vsel %vm165, %v144, 0
      %v170 = vsel %vm165, %v145, 0
      %v173 = vsel %vm165, %v146, 0
      %v176 = vsel %vm165, %v147, 0
      %v179 = vsel %vm165, %v148, 0
      %v182 = vsel %vm165, %v149, 0
      %v185 = vsel %vm165, %v150, 0
      %v188 = vsel %vm165, %v151, 0
      %v191 = vsel %vm165, %v152, 0
      %v194 = vsel %vm165, %v153, 0
      %v197 = vsel %vm165, %v154, 0
      %v200 = vsel %vm165, %v155, 0
      %v203 = vsel %vm165, %v156, 0
      %v206 = vsel %vm165, %v157, 0
      %v209 = vsel %vm165, %v158, 0
      %v212 = vsel %vm165, %v159, 0
      %214 = vmatprep.subr.mxu0 0.0
      %215 = vmatpush1.msra.mxu0 %v160
      %216 = vmatprep.subr.mxu0 0.0
      %217 = vmatpush1.msra.mxu0 %v161
      %218 = vmatprep.subr.mxu0 0.0
      %219 = vmatpush1.msra.mxu0 %v162
      %220 = vmatprep.subr.mxu0 0.0
      %221 = vmatpush1.msra.mxu0 %v163
      %222 = vmatprep.subr.mxu0 0.0
      %223 = vmatpush1.msra.mxu0 %v164
      %224 = vmatprep.subr.mxu0 0.0
      %225 = vmatpush1.msra.mxu0 0.0
      %226 = vmatprep.subr.mxu0 0.0
      %227 = vmatpush1.msra.mxu0 0.0
      %228 = vmatprep.subr.mxu0 0.0
      %229 = vmatpush1.msra.mxu0 0.0
      %230 = vmatprep.subr.mxu0 0.0
      %231 = vmatpush1.msra.mxu0 0.0
      %232 = vmatprep.subr.mxu0 0.0
      %233 = vmatpush1.msra.mxu0 0.0
      %234 = vmatprep.subr.mxu0 0.0
      %235 = vmatpush1.msra.mxu0 0.0
      %236 = vmatprep.subr.mxu0 0.0
      %237 = vmatpush1.msra.mxu0 0.0
      %238 = vmatprep.subr.mxu0 0.0
      %239 = vmatpush1.msra.mxu0 0.0
      %240 = vmatprep.subr.mxu0 0.0
      %241 = vmatpush1.msra.mxu0 0.0
      %242 = vmatprep.subr.mxu0 0.0
      %243 = vmatpush1.msra.mxu0 0.0
      %244 = vmatprep.subr.mxu0 0.0
      %245 = vmatpush1.msra.mxu0 0.0
      %246 = vmatprep.subr.mxu0 0.0
      %247 = vmatpush1.msra.mxu0 0.0
      %248 = vmatprep.subr.mxu0 0.0
      %249 = vmatpush1.msra.mxu0 0.0
      %250 = vmatprep.subr.mxu0 0.0
      %251 = vmatpush1.msra.mxu0 0.0
      %252 = vmatprep.subr.mxu0 0.0
      %253 = vmatpush1.msra.mxu0 0.0
      %254 = vmatprep.subr.mxu0 0.0
      %255 = vmatpush1.msra.mxu0 0.0
      %256 = vmatprep.subr.mxu0 0.0
      %257 = vmatpush1.msra.mxu0 0.0
      %258 = vmatprep.subr.mxu0 0.0
      %259 = vmatpush1.msra.mxu0 0.0
      %260 = vmatprep.subr.mxu0 0.0
      %261 = vmatpush1.msra.mxu0 0.0
      %262 = vmatprep.subr.mxu0 0.0
      %263 = vmatpush1.msra.mxu0 0.0
      %264 = vmatprep.subr.mxu0 0.0
      %265 = vmatpush1.msra.mxu0 0.0
      %266 = vmatprep.subr.mxu0 0.0
      %267 = vmatpush1.msra.mxu0 0.0
      %268 = vmatprep.subr.mxu0 0.0
      %269 = vmatpush1.msra.mxu0 0.0
      %270 = vmatprep.subr.mxu0 0.0
      %271 = vmatpush1.msra.mxu0 0.0
      %272 = vmatprep.subr.mxu0 0.0
      %273 = vmatpush1.msra.mxu0 0.0
      %274 = vmatprep.subr.mxu0 0.0
      %275 = vmatpush1.msra.mxu0 0.0
      %276 = vmatprep.subr.mxu0 0.0
      %277 = vmatpush1.msra.mxu0 0.0
      %278 = vmatprep.mubr.f32.mxu0 0.0
      %279 = vmatmul.mubr.f32.gmra.mrb[0].mxu0 %v167
      %v280 = vpop.f32.mrb[0].mxu0
      %v281 = vadd.f32 0.0, %v280
      %v282 = vpop.f32.mrb[0].mxu0
      %283 = vmatprep.mubr.f32.mxu0 0.0
      %284 = vmatmul.mubr.f32.gmra.mrb[0].mxu0 %v170
      %v285 = vpop.f32.mrb[0].mxu0
      %v286 = vadd.f32 0.0, %v285
      %v287 = vpop.f32.mrb[0].mxu0
      %288 = vmatprep.mubr.f32.mxu0 0.0
      %289 = vmatmul.mubr.f32.gmra.mrb[0].mxu0 %v173
      %v290 = vpop.f32.mrb[0].mxu0
      %v291 = vadd.f32 0.0, %v290
      %v292 = vpop.f32.mrb[0].mxu0
      %293 = vmatprep.mubr.f32.mxu0 0.0
      %294 = vmatmul.mubr.f32.gmra.mrb[0].mxu0 %v176
      %v295 = vpop.f32.mrb[0].mxu0
      %v296 = vadd.f32 0.0, %v295
      %v297 = vpop.f32.mrb[0].mxu0
      %298 = vmatprep.mubr.f32.mxu0 0.0
      %299 = vmatmul.mubr.f32.gmra.mrb[0].mxu0 %v179
      %v300 = vpop.f32.mrb[0].mxu0
      %v301 = vadd.f32 0.0, %v300
      %v302 = vpop.f32.mrb[0].mxu0
      %303 = vmatprep.mubr.f32.mxu0 0.0
      %304 = vmatmul.mubr.f32.gmra.mrb[0].mxu0 %v182
      %v305 = vpop.f32.mrb[0].mxu0
      %v306 = vadd.f32 0.0, %v305
      %v307 = vpop.f32.mrb[0].mxu0
      %308 = vmatprep.mubr.f32.mxu0 0.0
      %309 = vmatmul.mubr.f32.gmra.mrb[0].mxu0 %v185
      %v310 = vpop.f32.mrb[0].mxu0
      %v311 = vadd.f32 0.0, %v310
      %v312 = vpop.f32.mrb[0].mxu0
      %313 = vmatprep.mubr.f32.mxu0 0.0
      %314 = vmatmul.mubr.f32.gmra.mrb[0].mxu0 %v188
      %v315 = vpop.f32.mrb[0].mxu0
      %v316 = vadd.f32 0.0, %v315
      %v317 = vpop.f32.mrb[0].mxu0
      %318 = vmatprep.mubr.f32.mxu0 0.0
      %319 = vmatmul.mubr.f32.gmra.mrb[0].mxu0 %v191
      %v320 = vpop.f32.mrb[0].mxu0
      %v321 = vadd.f32 0.0, %v320
      %v322 = vpop.f32.mrb[0].mxu0
      %323 = vmatprep.mubr.f32.mxu0 0.0
      %324 = vmatmul.mubr.f32.gmra.mrb[0].mxu0 %v194
      %v325 = vpop.f32.mrb[0].mxu0
      %v326 = vadd.f32 0.0, %v325
      %v327 = vpop.f32.mrb[0].mxu0
      %328 = vmatprep.mubr.f32.mxu0 0.0
      %329 = vmatmul.mubr.f32.gmra.mrb[0].mxu0 %v197
      %v330 = vpop.f32.mrb[0].mxu0
      %v331 = vadd.f32 0.0, %v330
      %v332 = vpop.f32.mrb[0].mxu0
      %333 = vmatprep.mubr.f32.mxu0 0.0
      %334 = vmatmul.mubr.f32.gmra.mrb[0].mxu0 %v200
      %v335 = vpop.f32.mrb[0].mxu0
      %v336 = vadd.f32 0.0, %v335
      %v337 = vpop.f32.mrb[0].mxu0
      %338 = vmatprep.mubr.f32.mxu0 0.0
      %339 = vmatmul.mubr.f32.gmra.mrb[0].mxu0 %v203
      %v340 = vpop.f32.mrb[0].mxu0
      %v341 = vadd.f32 0.0, %v340
      %v342 = vpop.f32.mrb[0].mxu0
      %343 = vmatprep.mubr.f32.mxu0 0.0
      %344 = vmatmul.mubr.f32.gmra.mrb[0].mxu0 %v206
      %v345 = vpop.f32.mrb[0].mxu0
      %v346 = vadd.f32 0.0, %v345
      %v347 = vpop.f32.mrb[0].mxu0
      %348 = vmatprep.mubr.f32.mxu0 0.0
      %349 = vmatmul.mubr.f32.gmra.mrb[0].mxu0 %v209
      %v350 = vpop.f32.mrb[0].mxu0
      %v351 = vadd.f32 0.0, %v350
      %v352 = vpop.f32.mrb[0].mxu0
      %353 = vmatprep.mubr.f32.mxu0 0.0
      %354 = vmatmul.mubr.f32.gmra.mrb[0].mxu0 %v212
      %v355 = vpop.f32.mrb[0].mxu0
      %v356 = vadd.f32 0.0, %v355
      %v357 = vpop.f32.mrb[0].mxu0
      %358 = vdwg.mxu0
      %v359 = vadd.f32 %v281, %v286
      %v360 = vadd.f32 %v359, %v291
      %v361 = vadd.f32 %v360, %v296
      %v362 = vadd.f32 %v361, %v301
      %v363 = vadd.f32 %v362, %v306
      %v364 = vadd.f32 %v363, %v311
      %v365 = vadd.f32 %v364, %v316
      %v366 = vadd.f32 %v365, %v321
      %v367 = vadd.f32 %v366, %v326
      %v368 = vadd.f32 %v367, %v331
      %v369 = vadd.f32 %v368, %v336
      %v370 = vadd.f32 %v369, %v341
      %v371 = vadd.f32 %v370, %v346
      %v372 = vadd.f32 %v371, %v351
      %v373 = vadd.f32 %v372, %v356
      %v374 = vrot.slane %v373, 4
      %v375 = vadd.f32 %v373, %v374
      %v376 = vrot.slane %v375, 2
      %v377 = vadd.f32 %v375, %v376
      %v378 = vrot.slane %v377, 1
      %v379 = vadd.f32 %v377, %v378
      %v380 = vmul.f32 %v281, %v281
      %v381 = vmul.f32 %v286, %v286
      %v382 = vmul.f32 %v291, %v291
      %v383 = vmul.f32 %v296, %v296
      %v384 = vmul.f32 %v301, %v301
      %v385 = vmul.f32 %v306, %v306
      %v386 = vmul.f32 %v311, %v311
      %v387 = vmul.f32 %v316, %v316
      %v388 = vmul.f32 %v321, %v321
      %v389 = vmul.f32 %v326, %v326
      %v390 = vmul.f32 %v331, %v331
      %v391 = vmul.f32 %v336, %v336
      %v392 = vmul.f32 %v341, %v341
      %v393 = vmul.f32 %v346, %v346
      %v394 = vmul.f32 %v351, %v351
      %v395 = vmul.f32 %v356, %v356
      %v396 = vadd.f32 %v380, %v381
      %v397 = vadd.f32 %v396, %v382
      %v398 = vadd.f32 %v397, %v383
      %v399 = vadd.f32 %v398, %v384
      %v400 = vadd.f32 %v399, %v385
      %v401 = vadd.f32 %v400, %v386
      %v402 = vadd.f32 %v401, %v387
      %v403 = vadd.f32 %v402, %v388
      %v404 = vadd.f32 %v403, %v389
      %v405 = vadd.f32 %v404, %v390
      %v406 = vadd.f32 %v405, %v391
      %v407 = vadd.f32 %v406, %v392
      %v408 = vadd.f32 %v407, %v393
      %v409 = vadd.f32 %v408, %v394
      %v410 = vadd.f32 %v409, %v395
      %v411 = vrot.slane %v410, 4
      %v412 = vadd.f32 %v410, %v411
      %v413 = vrot.slane %v412, 2
      %v414 = vadd.f32 %v412, %v413
      %v415 = vrot.slane %v414, 1
      %v416 = vadd.f32 %v414, %v415
      %vm417 = vcmask 1040384
      %v418 = vsel %vm417, %v379, %v416
      %419 = vst [vmem:[%s143] sm:$0x3] %v418
      %p420 = scmp.lt.s32.totalorder %s13, 3
      %s421 = scalar_select %p420, %s13, 3
      %s422 = smul.addr %s421, 2
      %s423 = scalar_lea.vmem %s2, %s422
      // Predicated region
      $region29: #{conv_batchnorm.2} parent=27 // pred_check
        %p424 = pneg %p78
      $region30: #{conv_batchnorm.2} parent=27 // pred_check_branch
        %426 = sbr.rel (%p424) target = $region32
      $region31: #{conv_batchnorm.2} parent=27 // pred_region
        _
      $region32: #{conv_batchnorm.2} parent=27 // pred_fallthru
        _
    $region28: #{conv_batchnorm.2} parent=5 // pred_fallthru
      _
    %p427 = scmp.le.s32.totalorder 2, %s8
    // Predicated region
    $region33: #{conv_batchnorm.2} parent=5 // pred_check
      %p428 = pneg %p427
    $region34: #{conv_batchnorm.2} parent=5 // pred_check_branch
      %430 = sbr.rel (%p428) target = $region36
    $region35: #{conv_batchnorm.2} parent=5 // pred_region
      %s431 = ssub.s32 %s8, 2
      // Predicated region
      $region37: #{conv_batchnorm.2} parent=35 // pred_check
        %p432 = pneg %p84
      $region38: #{conv_batchnorm.2} parent=35 // pred_check_branch
        %434 = sbr.rel (%p432) target = $region40
      $region39: #{conv_batchnorm.2} parent=35 // pred_region
        %p435 = scmp.lt.s32.totalorder %s14, 3
        %s436 = scalar_select %p435, %s14, 3
        %s437 = smul.addr %s436, 2
        %s438 = scalar_lea.vmem %s2, %s437
      $region40: #{conv_batchnorm.2} parent=35 // pred_fallthru
        _
    $region36: #{conv_batchnorm.2} parent=5 // pred_fallthru
      _
  $region6: #{conv_batchnorm.2} parent=0 // loop_footer
    %s12 = sadd.s32 1, %s8
  $region7: #{conv_batchnorm.2} parent=0 // loop_footer_branch
    %7 = sbr.rel target = $region3
  $region8: #{conv_batchnorm.2} parent=0 // loop_exit
    _

// kernel: conv_batchnorm.3
$region0: #{conv_batchnorm.3}
  #allocation0 [shape = 'u32[]', space=smem, size = 0x4, offset = 0x4, fixed_abs, tag = 'smem constant byte address 0x4 - core index']
  #allocation1 [shape = 'u32[144,128]{1,0:T(1,128)}', space=vmem, size = 0x12000, scoped, tag = 'internal scratch']
  %s0 = inlined_call_operand.vmem [shape: f32[512,40], index: 0, kind: input, shape index: {}]
  %s1 = inlined_call_operand.vmem [shape: f32[40,128], index: 1, kind: input, shape index: {}]
  %s2 = inlined_call_operand.vmem [shape: f32[1,128], index: 2, kind: input, shape index: {}]
  %s3 = inlined_call_operand.vmem [shape: f32[1,128], index: 3, kind: input, shape index: {}]
  %s4 = inlined_call_operand.vmem [shape: f32[512,128], index: 4, kind: output, shape index: {}]
  %s5 = sld [smem:[#allocation0]]
  $region49: #{conv_batchnorm.3} parent=0
    _
  %s7 = ssub.s32 1, %s5
  %s8 = scalar_select 0, %s7, %s5
  loop: start=0, step=1, limit=6
  $region2: #{conv_batchnorm.3} parent=0 // loop_pre_header
    _
  $region3: #{conv_batchnorm.3} parent=0 // loop_header
    %s10 = sphi 0, %s14
    %p11 = scmp.ge.s32.totalorder %s10, 6
    %s20 = sphi 0, %s22
    %s23 = sphi 0, %s20
    %s24 = sphi 0, %s23
    %s40 = sphi 0, %s24
    %s44 = sphi 0, %s44
    %s46 = sphi 0, %s44
    %s47 = sphi 0, %s46
    %s61 = sphi 0, %s47
    %s65 = sphi 0, %s65
    %s67 = sphi 0, %s65
    %s68 = sphi 0, %s67
    %s82 = sphi 0, %s68
    %s86 = sphi 0, %s86
    %s88 = sphi 0, %s86
    %s89 = sphi 0, %s88
    %s103 = sphi 0, %s89
    %s109 = sphi 0, %s111
    %s112 = sphi 0, %s109
    %s113 = sphi 0, %s112
    %s129 = sphi 0, %s113
  $region4: #{conv_batchnorm.3} parent=0 // loop_header_branch
    %13 = sbr.rel (%p11) target = $region8
  $region5: #{conv_batchnorm.3} parent=0 // loop_body
    %s15 = ssub.s32 %s10, 1
    %s16 = ssub.s32 %s10, 2
    %s17 = sadd.s32 %s10, 1
    %s18 = ssub.s32 %s10, %s17
    %p19 = scmp.eq.s32.totalorder %s18, 0
    %s21 = sadd.s32 %s20, 1
    %s22 = scalar_select %p19, %s20, %s21
    %p25 = pneg %p19
    %p26 = scmp.eq.s32.totalorder %s10, 3
    %p27 = por %p25, %p26
    %p28 = scmp.ne.s32.totalorder %s20, %s23
    %p29 = scmp.eq.s32.totalorder %s10, 0
    %p30 = por %p28, %p29
    %p31 = scmp.ne.s32.totalorder %s20, %s23
    %p32 = scmp.eq.s32.totalorder %s15, 3
    %p33 = por %p31, %p32
    %p34 = scmp.ne.s32.totalorder %s23, %s24
    %p35 = scmp.eq.s32.totalorder %s15, 0
    %p36 = por %p34, %p35
    %p37 = scmp.ne.s32.totalorder %s23, %s24
    %p38 = scmp.eq.s32.totalorder %s16, 3
    %p39 = por %p37, %p38
    %p41 = scmp.ne.s32.totalorder %s24, %s40
    %p42 = scmp.eq.s32.totalorder %s16, 0
    %p43 = por %p41, %p42
    %s45 = sadd.s32 %s44, 1
    %p48 = scmp.eq.s32.totalorder %s10, 3
    %p49 = scmp.ne.s32.totalorder %s44, %s46
    %p50 = scmp.eq.s32.totalorder %s10, 0
    %p51 = por %p49, %p50
    %p52 = scmp.ne.s32.totalorder %s44, %s46
    %p53 = scmp.eq.s32.totalorder %s15, 3
    %p54 = por %p52, %p53
    %p55 = scmp.ne.s32.totalorder %s46, %s47
    %p56 = scmp.eq.s32.totalorder %s15, 0
    %p57 = por %p55, %p56
    %p58 = scmp.ne.s32.totalorder %s46, %s47
    %p59 = scmp.eq.s32.totalorder %s16, 3
    %p60 = por %p58, %p59
    %p62 = scmp.ne.s32.totalorder %s47, %s61
    %p63 = scmp.eq.s32.totalorder %s16, 0
    %p64 = por %p62, %p63
    %s66 = sadd.s32 %s65, 1
    %p69 = scmp.eq.s32.totalorder %s10, 3
    %p70 = scmp.ne.s32.totalorder %s65, %s67
    %p71 = scmp.eq.s32.totalorder %s10, 0
    %p72 = por %p70, %p71
    %p73 = scmp.ne.s32.totalorder %s65, %s67
    %p74 = scmp.eq.s32.totalorder %s15, 3
    %p75 = por %p73, %p74
    %p76 = scmp.ne.s32.totalorder %s67, %s68
    %p77 = scmp.eq.s32.totalorder %s15, 0
    %p78 = por %p76, %p77
    %p79 = scmp.ne.s32.totalorder %s67, %s68
    %p80 = scmp.eq.s32.totalorder %s16, 3
    %p81 = por %p79, %p80
    %p83 = scmp.ne.s32.totalorder %s68, %s82
    %p84 = scmp.eq.s32.totalorder %s16, 0
    %p85 = por %p83, %p84
    %s87 = sadd.s32 %s86, 1
    %p90 = scmp.eq.s32.totalorder %s10, 3
    %p91 = scmp.ne.s32.totalorder %s86, %s88
    %p92 = scmp.eq.s32.totalorder %s10, 0
    %p93 = por %p91, %p92
    %p94 = scmp.ne.s32.totalorder %s86, %s88
    %p95 = scmp.eq.s32.totalorder %s15, 3
    %p96 = por %p94, %p95
    %p97 = scmp.ne.s32.totalorder %s88, %s89
    %p98 = scmp.eq.s32.totalorder %s15, 0
    %p99 = por %p97, %p98
    %p100 = scmp.ne.s32.totalorder %s88, %s89
    %p101 = scmp.eq.s32.totalorder %s16, 3
    %p102 = por %p100, %p101
    %p104 = scmp.ne.s32.totalorder %s89, %s103
    %p105 = scmp.eq.s32.totalorder %s16, 0
    %p106 = por %p104, %p105
    %s107 = ssub.s32 %s10, %s17
    %p108 = scmp.eq.s32.totalorder %s107, 0
    %s110 = sadd.s32 %s109, 1
    %s111 = scalar_select %p108, %s109, %s110
    %p114 = pneg %p108
    %p115 = scmp.eq.s32.totalorder %s10, 3
    %p116 = por %p114, %p115
    %p117 = scmp.ne.s32.totalorder %s109, %s112
    %p118 = scmp.eq.s32.totalorder %s10, 0
    %p119 = por %p117, %p118
    %p120 = scmp.ne.s32.totalorder %s109, %s112
    %p121 = scmp.eq.s32.totalorder %s15, 3
    %p122 = por %p120, %p121
    %p123 = scmp.ne.s32.totalorder %s112, %s113
    %p124 = scmp.eq.s32.totalorder %s15, 0
    %p125 = por %p123, %p124
    %p126 = scmp.ne.s32.totalorder %s112, %s113
    %p127 = scmp.eq.s32.totalorder %s16, 3
    %p128 = por %p126, %p127
    %p130 = scmp.ne.s32.totalorder %s113, %s129
    %p131 = scmp.eq.s32.totalorder %s16, 0
    %p132 = por %p130, %p131
    %p133 = scmp.le.s32.totalorder 1, %s10
    %p134 = scmp.lt.s32.totalorder %s10, 5
    %p135 = pnand %p133, %p134
    %p136 = pneg %p135
    // Predicated region
    $region9: #{conv_batchnorm.3} parent=5 // pred_check
      _
    $region10: #{conv_batchnorm.3} parent=5 // pred_check_branch
      %138 = sbr.rel (%p135) target = $region12
    $region11: #{conv_batchnorm.3} parent=5 // pred_region
      %s139 = ssub.s32 %s10, 1
      // Predicated region
      $region13: #{conv_batchnorm.3} parent=11 // pred_check
        %p140 = pneg %p57
      $region14: #{conv_batchnorm.3} parent=11 // pred_check_branch
        %142 = sbr.rel (%p140) target = $region16
      $region15: #{conv_batchnorm.3} parent=11 // pred_region
        _
      $region16: #{conv_batchnorm.3} parent=11 // pred_fallthru
        _
      // Predicated region
      $region17: #{conv_batchnorm.3} parent=11 // pred_check
        %p143 = pneg %p78
      $region18: #{conv_batchnorm.3} parent=11 // pred_check_branch
        %145 = sbr.rel (%p143) target = $region20
      $region19: #{conv_batchnorm.3} parent=11 // pred_region
        _
      $region20: #{conv_batchnorm.3} parent=11 // pred_fallthru
        _
      // Predicated region
      $region21: #{conv_batchnorm.3} parent=11 // pred_check
        %p146 = pneg %p99
      $region22: #{conv_batchnorm.3} parent=11 // pred_check_branch
        %148 = sbr.rel (%p146) target = $region24
      $region23: #{conv_batchnorm.3} parent=11 // pred_region
        _
      $region24: #{conv_batchnorm.3} parent=11 // pred_fallthru
        _
    $region12: #{conv_batchnorm.3} parent=5 // pred_fallthru
      _
    %p149 = scmp.lt.s32.totalorder %s10, 4
    // Predicated region
    $region25: #{conv_batchnorm.3} parent=5 // pred_check
      %p150 = pneg %p149
    $region26: #{conv_batchnorm.3} parent=5 // pred_check_branch
      %152 = sbr.rel (%p150) target = $region28
    $region27: #{conv_batchnorm.3} parent=5 // pred_region
      // Predicated region
      $region29: #{conv_batchnorm.3} parent=27 // pred_check
        %p153 = pneg %p30
      $region30: #{conv_batchnorm.3} parent=27 // pred_check_branch
        %155 = sbr.rel (%p153) target = $region32
      $region31: #{conv_batchnorm.3} parent=27 // pred_region
        %s156 = smul.u32 16, %s10
        %p157 = scmp.lt.s32.totalorder %s156, 63
        %s158 = scalar_select %p157, %s156, 63
        %s159 = smul.addr %s158, 8
        %s160 = scalar_lea.vmem %s0, %s159
        %s161 = smul.u32 16, %s10
      $region32: #{conv_batchnorm.3} parent=27 // pred_fallthru
        _
    $region28: #{conv_batchnorm.3} parent=5 // pred_fallthru
      _
    %p162 = scmp.le.s32.totalorder 1, %s10
    %p163 = scmp.lt.s32.totalorder %s10, 5
    %p164 = pnand %p162, %p163
    %p165 = pneg %p164
    // Predicated region
    $region33: #{conv_batchnorm.3} parent=5 // pred_check
      _
    $region34: #{conv_batchnorm.3} parent=5 // pred_check_branch
      %167 = sbr.rel (%p164) target = $region36
    $region35: #{conv_batchnorm.3} parent=5 // pred_region
      %s168 = ssub.s32 %s10, 1
      %s169 = smul.u32 16, %s15
      %p170 = scmp.lt.s32.totalorder %s169, 63
      %s171 = scalar_select %p170, %s169, 63
      %s172 = smul.addr %s171, 8
      %s173 = scalar_lea.vmem %s0, %s172
      %p174 = pneg %p36
      %p175 = pneg %p33
      %p176 = pneg %p57
      %p177 = pneg %p54
      %p178 = pneg %p78
      %p179 = pneg %p75
      %p180 = pneg %p99
      %p181 = pneg %p96
      %p182 = pneg %p125
      %p183 = pneg %p122
      %s184 = smul.u32 16, %s15
      %p185 = scmp.lt.s32.totalorder %s184, 63
      %s186 = scalar_select %p185, %s184, 63
      %s187 = smul.addr %s186, 8
      %s188 = scalar_lea.vmem %s4, %s187
      %s189 = smul.u32 16, %s15
      %p190 = scmp.lt.s32.totalorder %s189, 63
      %s191 = scalar_select %p190, %s189, 63
      %s192 = smul.addr %s191, 8
      %s193 = scalar_lea.vmem %s0, %s192
      %s194 = smul.u32 16, %s15
      %s195 = smul.u32 16, %s15
      %p196 = scmp.lt.s32.totalorder %s195, 63
      %s197 = scalar_select %p196, %s195, 63
      %s198 = smul.addr %s197, 8
      %s199 = scalar_lea.vmem %s4, %s198
      %s200 = smul.u32 16, %s15
      %v201 = vld [vmem:[%s193] sm:$0xff]
      %v202 = vld [vmem:[%s193 + $0x8] sm:$0xff]
      %v203 = vld [vmem:[%s193 + $0x10] sm:$0xff]
      %v204 = vld [vmem:[%s193 + $0x18] sm:$0xff]
      %v205 = vld [vmem:[%s193 + $0x20] sm:$0xff]
      %v206 = vld [vmem:[%s193 + $0x28] sm:$0xff]
      %v207 = vld [vmem:[%s193 + $0x30] sm:$0xff]
      %v208 = vld [vmem:[%s193 + $0x38] sm:$0xff]
      %v209 = vld [vmem:[%s193 + $0x40] sm:$0xff]
      %v210 = vld [vmem:[%s193 + $0x48] sm:$0xff]
      %v211 = vld [vmem:[%s193 + $0x50] sm:$0xff]
      %v212 = vld [vmem:[%s193 + $0x58] sm:$0xff]
      %v213 = vld [vmem:[%s193 + $0x60] sm:$0xff]
      %v214 = vld [vmem:[%s193 + $0x68] sm:$0xff]
      %v215 = vld [vmem:[%s193 + $0x70] sm:$0xff]
      %v216 = vld [vmem:[%s193 + $0x78] sm:$0xff]
      %v217 = vld [vmem:[%s1] sm:$0xff]
      %v218 = vld [vmem:[%s1 + $0x8] sm:$0xff]
      %v219 = vld [vmem:[%s1 + $0x10] sm:$0xff]
      %v220 = vld [vmem:[%s1 + $0x18] sm:$0xff]
      %v221 = vld [vmem:[%s1 + $0x20] sm:$0xff]
      %vm222 = vcmask 326656
      %v224 = vsel %vm222, %v201, 0
      %v227 = vsel %vm222, %v202, 0
      %v230 = vsel %vm222, %v203, 0
      %v233 = vsel %vm222, %v204, 0
      %v236 = vsel %vm222, %v205, 0
      %v239 = vsel %vm222, %v206, 0
      %v242 = vsel %vm222, %v207, 0
      %v245 = vsel %vm222, %v208, 0
      %v248 = vsel %vm222, %v209, 0
      %v251 = vsel %vm222, %v210, 0
      %v254 = vsel %vm222, %v211, 0
      %v257 = vsel %vm222, %v212, 0
      %v260 = vsel %vm222, %v213, 0
      %v263 = vsel %vm222, %v214, 0
      %v266 = vsel %vm222, %v215, 0
      %v269 = vsel %vm222, %v216, 0
      %271 = vmatprep.subr.mxu0 0.0
      %272 = vmatpush1.msra.mxu0 %v217
      %273 = vmatprep.subr.mxu0 0.0
      %274 = vmatpush1.msra.mxu0 %v218
      %275 = vmatprep.subr.mxu0 0.0
      %276 = vmatpush1.msra.mxu0 %v219
      %277 = vmatprep.subr.mxu0 0.0
      %278 = vmatpush1.msra.mxu0 %v220
      %279 = vmatprep.subr.mxu0 0.0
      %280 = vmatpush1.msra.mxu0 %v221
      %281 = vmatprep.subr.mxu0 0.0
      %282 = vmatpush1.msra.mxu0 0.0
      %283 = vmatprep.subr.mxu0 0.0
      %284 = vmatpush1.msra.mxu0 0.0
      %285 = vmatprep.subr.mxu0 0.0
      %286 = vmatpush1.msra.mxu0 0.0
      %287 = vmatprep.subr.mxu0 0.0
      %288 = vmatpush1.msra.mxu0 0.0
      %289 = vmatprep.subr.mxu0 0.0
      %290 = vmatpush1.msra.mxu0 0.0
      %291 = vmatprep.subr.mxu0 0.0
      %292 = vmatpush1.msra.mxu0 0.0
      %293 = vmatprep.subr.mxu0 0.0
      %294 = vmatpush1.msra.mxu0 0.0
      %295 = vmatprep.subr.mxu0 0.0
      %296 = vmatpush1.msra.mxu0 0.0
      %297 = vmatprep.subr.mxu0 0.0
      %298 = vmatpush1.msra.mxu0 0.0
      %299 = vmatprep.subr.mxu0 0.0
      %300 = vmatpush1.msra.mxu0 0.0
      %301 = vmatprep.subr.mxu0 0.0
      %302 = vmatpush1.msra.mxu0 0.0
      %303 = vmatprep.subr.mxu0 0.0
      %304 = vmatpush1.msra.mxu0 0.0
      %305 = vmatprep.subr.mxu0 0.0
      %306 = vmatpush1.msra.mxu0 0.0
      %307 = vmatprep.subr.mxu0 0.0
      %308 = vmatpush1.msra.mxu0 0.0
      %309 = vmatprep.subr.mxu0 0.0
      %310 = vmatpush1.msra.mxu0 0.0
      %311 = vmatprep.subr.mxu0 0.0
      %312 = vmatpush1.msra.mxu0 0.0
      %313 = vmatprep.subr.mxu0 0.0
      %314 = vmatpush1.msra.mxu0 0.0
      %315 = vmatprep.subr.mxu0 0.0
      %316 = vmatpush1.msra.mxu0 0.0
      %317 = vmatprep.subr.mxu0 0.0
      %318 = vmatpush1.msra.mxu0 0.0
      %319 = vmatprep.subr.mxu0 0.0
      %320 = vmatpush1.msra.mxu0 0.0
      %321 = vmatprep.subr.mxu0 0.0
      %322 = vmatpush1.msra.mxu0 0.0
      %323 = vmatprep.subr.mxu0 0.0
      %324 = vmatpush1.msra.mxu0 0.0
      %325 = vmatprep.subr.mxu0 0.0
      %326 = vmatpush1.msra.mxu0 0.0
      %327 = vmatprep.subr.mxu0 0.0
      %328 = vmatpush1.msra.mxu0 0.0
      %329 = vmatprep.subr.mxu0 0.0
      %330 = vmatpush1.msra.mxu0 0.0
      %331 = vmatprep.subr.mxu0 0.0
      %332 = vmatpush1.msra.mxu0 0.0
      %333 = vmatprep.subr.mxu0 0.0
      %334 = vmatpush1.msra.mxu0 0.0
      %335 = vmatprep.mubr.f32.mxu0 0.0
      %336 = vmatmul.mubr.f32.gmra.mrb[0].mxu0 %v224
      %v337 = vpop.f32.mrb[0].mxu0
      %v338 = vadd.f32 0.0, %v337
      %v339 = vpop.f32.mrb[0].mxu0
      %340 = vmatprep.mubr.f32.mxu0 0.0
      %341 = vmatmul.mubr.f32.gmra.mrb[0].mxu0 %v227
      %v342 = vpop.f32.mrb[0].mxu0
      %v343 = vadd.f32 0.0, %v342
      %v344 = vpop.f32.mrb[0].mxu0
      %345 = vmatprep.mubr.f32.mxu0 0.0
      %346 = vmatmul.mubr.f32.gmra.mrb[0].mxu0 %v230
      %v347 = vpop.f32.mrb[0].mxu0
      %v348 = vadd.f32 0.0, %v347
      %v349 = vpop.f32.mrb[0].mxu0
      %350 = vmatprep.mubr.f32.mxu0 0.0
      %351 = vmatmul.mubr.f32.gmra.mrb[0].mxu0 %v233
      %v352 = vpop.f32.mrb[0].mxu0
      %v353 = vadd.f32 0.0, %v352
      %v354 = vpop.f32.mrb[0].mxu0
      %355 = vmatprep.mubr.f32.mxu0 0.0
      %356 = vmatmul.mubr.f32.gmra.mrb[0].mxu0 %v236
      %v357 = vpop.f32.mrb[0].mxu0
      %v358 = vadd.f32 0.0, %v357
      %v359 = vpop.f32.mrb[0].mxu0
      %360 = vmatprep.mubr.f32.mxu0 0.0
      %361 = vmatmul.mubr.f32.gmra.mrb[0].mxu0 %v239
      %v362 = vpop.f32.mrb[0].mxu0
      %v363 = vadd.f32 0.0, %v362
      %v364 = vpop.f32.mrb[0].mxu0
      %365 = vmatprep.mubr.f32.mxu0 0.0
      %366 = vmatmul.mubr.f32.gmra.mrb[0].mxu0 %v242
      %v367 = vpop.f32.mrb[0].mxu0
      %v368 = vadd.f32 0.0, %v367
      %v369 = vpop.f32.mrb[0].mxu0
      %370 = vmatprep.mubr.f32.mxu0 0.0
      %371 = vmatmul.mubr.f32.gmra.mrb[0].mxu0 %v245
      %v372 = vpop.f32.mrb[0].mxu0
      %v373 = vadd.f32 0.0, %v372
      %v374 = vpop.f32.mrb[0].mxu0
      %375 = vmatprep.mubr.f32.mxu0 0.0
      %376 = vmatmul.mubr.f32.gmra.mrb[0].mxu0 %v248
      %v377 = vpop.f32.mrb[0].mxu0
      %v378 = vadd.f32 0.0, %v377
      %v379 = vpop.f32.mrb[0].mxu0
      %380 = vmatprep.mubr.f32.mxu0 0.0
      %381 = vmatmul.mubr.f32.gmra.mrb[0].mxu0 %v251
      %v382 = vpop.f32.mrb[0].mxu0
      %v383 = vadd.f32 0.0, %v382
      %v384 = vpop.f32.mrb[0].mxu0
      %385 = vmatprep.mubr.f32.mxu0 0.0
      %386 = vmatmul.mubr.f32.gmra.mrb[0].mxu0 %v254
      %v387 = vpop.f32.mrb[0].mxu0
      %v388 = vadd.f32 0.0, %v387
      %v389 = vpop.f32.mrb[0].mxu0
      %390 = vmatprep.mubr.f32.mxu0 0.0
      %391 = vmatmul.mubr.f32.gmra.mrb[0].mxu0 %v257
      %v392 = vpop.f32.mrb[0].mxu0
      %v393 = vadd.f32 0.0, %v392
      %v394 = vpop.f32.mrb[0].mxu0
      %395 = vmatprep.mubr.f32.mxu0 0.0
      %396 = vmatmul.mubr.f32.gmra.mrb[0].mxu0 %v260
      %v397 = vpop.f32.mrb[0].mxu0
      %v398 = vadd.f32 0.0, %v397
      %v399 = vpop.f32.mrb[0].mxu0
      %400 = vmatprep.mubr.f32.mxu0 0.0
      %401 = vmatmul.mubr.f32.gmra.mrb[0].mxu0 %v263
      %v402 = vpop.f32.mrb[0].mxu0
      %v403 = vadd.f32 0.0, %v402
      %v404 = vpop.f32.mrb[0].mxu0
      %405 = vmatprep.mubr.f32.mxu0 0.0
      %406 = vmatmul.mubr.f32.gmra.mrb[0].mxu0 %v266
      %v407 = vpop.f32.mrb[0].mxu0
      %v408 = vadd.f32 0.0, %v407
      %v409 = vpop.f32.mrb[0].mxu0
      %410 = vmatprep.mubr.f32.mxu0 0.0
      %411 = vmatmul.mubr.f32.gmra.mrb[0].mxu0 %v269
      %v412 = vpop.f32.mrb[0].mxu0
      %v413 = vadd.f32 0.0, %v412
      %v414 = vpop.f32.mrb[0].mxu0
      %415 = vdwg.mxu0
      %v416 = vld [vmem:[%s2] sm:$0x1]
      %v418 = vlaneseq
      %v419 = vshrl.u32 %v418, 7
      %v420 = vsub.s32 0, %v419
      %v421 = vrot.slane %v416, %v420
      %v423 = vmul.f32 %v338, %v421
      %v424 = vmul.f32 %v343, %v421
      %v425 = vmul.f32 %v348, %v421
      %v426 = vmul.f32 %v353, %v421
      %v427 = vmul.f32 %v358, %v421
      %v428 = vmul.f32 %v363, %v421
      %v429 = vmul.f32 %v368, %v421
      %v430 = vmul.f32 %v373, %v421
      %v431 = vmul.f32 %v378, %v421
      %v432 = vmul.f32 %v383, %v421
      %v433 = vmul.f32 %v388, %v421
      %v434 = vmul.f32 %v393, %v421
      %v435 = vmul.f32 %v398, %v421
      %v436 = vmul.f32 %v403, %v421
      %v437 = vmul.f32 %v408, %v421
      %v438 = vmul.f32 %v413, %v421
      %v439 = vld [vmem:[%s3] sm:$0x1]
      %v441 = vlaneseq
      %v442 = vshrl.u32 %v441, 7
      %v443 = vsub.s32 0, %v442
      %v444 = vrot.slane %v439, %v443
      %v446 = vadd.f32 %v423, %v444
      %v447 = vadd.f32 %v424, %v444
      %v448 = vadd.f32 %v425, %v444
      %v449 = vadd.f32 %v426, %v444
      %v450 = vadd.f32 %v427, %v444
      %v451 = vadd.f32 %v428, %v444
      %v452 = vadd.f32 %v429, %v444
      %v453 = vadd.f32 %v430, %v444
      %v454 = vadd.f32 %v431, %v444
      %v455 = vadd.f32 %v432, %v444
      %v456 = vadd.f32 %v433, %v444
      %v457 = vadd.f32 %v434, %v444
      %v458 = vadd.f32 %v435, %v444
      %v459 = vadd.f32 %v436, %v444
      %v460 = vadd.f32 %v437, %v444
      %v461 = vadd.f32 %v438, %v444
      %462 = vst [vmem:[%s199] sm:$0xff] %v446
      %463 = vst [vmem:[%s199 + $0x8] sm:$0xff] %v447
      %464 = vst [vmem:[%s199 + $0x10] sm:$0xff] %v448
      %465 = vst [vmem:[%s199 + $0x18] sm:$0xff] %v449
      %466 = vst [vmem:[%s199 + $0x20] sm:$0xff] %v450
      %467 = vst [vmem:[%s199 + $0x28] sm:$0xff] %v451
      %468 = vst [vmem:[%s199 + $0x30] sm:$0xff] %v452
      %469 = vst [vmem:[%s199 + $0x38] sm:$0xff] %v453
      %470 = vst [vmem:[%s199 + $0x40] sm:$0xff] %v454
      %471 = vst [vmem:[%s199 + $0x48] sm:$0xff] %v455
      %472 = vst [vmem:[%s199 + $0x50] sm:$0xff] %v456
      %473 = vst [vmem:[%s199 + $0x58] sm:$0xff] %v457
      %474 = vst [vmem:[%s199 + $0x60] sm:$0xff] %v458
      %475 = vst [vmem:[%s199 + $0x68] sm:$0xff] %v459
      %476 = vst [vmem:[%s199 + $0x70] sm:$0xff] %v460
      %477 = vst [vmem:[%s199 + $0x78] sm:$0xff] %v461
      %s478 = smul.u32 16, %s15
      %p479 = scmp.lt.s32.totalorder %s478, 63
      %s480 = scalar_select %p479, %s478, 63
      %s481 = smul.addr %s480, 8
      %s482 = scalar_lea.vmem %s4, %s481
      // Predicated region
      $region37: #{conv_batchnorm.3} parent=35 // pred_check
        %p483 = pneg %p122
      $region38: #{conv_batchnorm.3} parent=35 // pred_check_branch
        %485 = sbr.rel (%p483) target = $region40
      $region39: #{conv_batchnorm.3} parent=35 // pred_region
        %s486 = smul.u32 16, %s15
      $region40: #{conv_batchnorm.3} parent=35 // pred_fallthru
        _
    $region36: #{conv_batchnorm.3} parent=5 // pred_fallthru
      _
    %p487 = scmp.le.s32.totalorder 2, %s10
    // Predicated region
    $region41: #{conv_batchnorm.3} parent=5 // pred_check
      %p488 = pneg %p487
    $region42: #{conv_batchnorm.3} parent=5 // pred_check_branch
      %490 = sbr.rel (%p488) target = $region44
    $region43: #{conv_batchnorm.3} parent=5 // pred_region
      %s491 = ssub.s32 %s10, 2
      // Predicated region
      $region45: #{conv_batchnorm.3} parent=43 // pred_check
        %p492 = pneg %p128
      $region46: #{conv_batchnorm.3} parent=43 // pred_check_branch
        %494 = sbr.rel (%p492) target = $region48
      $region47: #{conv_batchnorm.3} parent=43 // pred_region
        %s495 = smul.u32 16, %s16
        %p496 = scmp.lt.s32.totalorder %s495, 63
        %s497 = scalar_select %p496, %s495, 63
        %s498 = smul.addr %s497, 8
        %s499 = scalar_lea.vmem %s4, %s498
      $region48: #{conv_batchnorm.3} parent=43 // pred_fallthru
        _
    $region44: #{conv_batchnorm.3} parent=5 // pred_fallthru
      _
  $region6: #{conv_batchnorm.3} parent=0 // loop_footer
    %s14 = sadd.s32 1, %s10
  $region7: #{conv_batchnorm.3} parent=0 // loop_footer_branch
    %9 = sbr.rel target = $region3
  $region8: #{conv_batchnorm.3} parent=0 // loop_exit
    _

</llo_original>
